<compile_context>
chip_gen: v6e
topology: v6e:2x2x1
jax: 0.10.0
libtpu: 0.0.40
codegen_flags: <defaults>
</compile_context>

<pallas_src>
import jax
import jax.numpy as jnp
from jax.experimental import pallas as pl
from jax.experimental.pallas import tpu as pltpu


LEAKY_SLOPE = 0.01  # nn.LeakyReLU() default negative_slope


def _entropy_params_kernel(x_ref, w1_ref, b1_ref, w2_ref, b2_ref,
                           w3_ref, b3_ref, o_ref):
    # x_ref: (1, C_in, TILE_P) block of pixels (pixels on the lane axis).
    # wk_ref: (C_out, C_in) native conv-weight orientation; bk_ref: (C_out, 1).
    x = x_ref[0]  # (C_in, TILE_P)

    h = jnp.dot(w1_ref[...], x, preferred_element_type=jnp.float32) + b1_ref[...]
    h = jnp.where(h > 0, h, LEAKY_SLOPE * h)

    h = jnp.dot(w2_ref[...], h, preferred_element_type=jnp.float32) + b2_ref[...]
    h = jnp.where(h > 0, h, LEAKY_SLOPE * h)

    h = jnp.dot(w3_ref[...], h, preferred_element_type=jnp.float32) + b3_ref[...]

    o_ref[0] = h.astype(o_ref.dtype)


def _round_up(x, m):
    return ((x + m - 1) // m) * m


def entropy_parameters_pallas(x_nchw, params, *, tile_p=1024):
    """x_nchw: (N, C_in, H, W) float32.

    params: dict with w1,w2,w3 of shape (C_out, C_in) and b1,b2,b3 of shape
    (C_out, 1) -- the native PyTorch 1x1-conv weight orientation.
    """
    w1, b1 = params["w1"], params["b1"]
    w2, b2 = params["w2"], params["b2"]
    w3, b3 = params["w3"], params["b3"]

    N, C_in, H, W = x_nchw.shape
    C1 = w1.shape[0]
    C2 = w2.shape[0]
    C3 = w3.shape[0]
    HW = H * W

    # NCHW -> (N, C_in, H*W): pure reshape, no transpose / extra HBM pass.
    x_flat = x_nchw.reshape(N, C_in, HW)

    # Pixel tile: multiple of 128 (lane width), capped by the (rounded) pixel
    # count so small images don't over-pad.
    tile_p = max(128, min(int(tile_p), _round_up(HW, 128)))
    tile_p = _round_up(tile_p, 128)

    HW_pad = _round_up(HW, tile_p)
    if HW_pad != HW:
        # Pad the tail pixels; padded outputs are sliced off below.
        x_flat = jnp.pad(x_flat, ((0, 0), (0, 0), (0, HW_pad - HW)))

    grid = (N, HW_pad // tile_p)

    # Rough VMEM budget: double-buffered in/out blocks + weights + f32
    # intermediates; clamped to [32 MiB, 48 MiB] so it is safe on v7x's 64 MiB
    # physical VMEM while still raising the smaller scoped defaults.
    bpe = 4
    weights_bytes = 2 * bpe * sum(int(a.size) for a in (w1, b1, w2, b2, w3, b3))
    io_bytes = 2 * bpe * (C_in + C3) * tile_p
    interm_bytes = bpe * (C1 + C2) * tile_p
    est = weights_bytes + io_bytes + interm_bytes
    vmem_limit = min(max(2 * est, 32 * 1024 * 1024), 48 * 1024 * 1024)

    full = lambda arr: pl.BlockSpec(arr.shape, lambda n, p: (0, 0))

    out_flat = pl.pallas_call(
        _entropy_params_kernel,
        out_shape=jax.ShapeDtypeStruct((N, C3, HW_pad), x_nchw.dtype),
        grid_spec=pltpu.PrefetchScalarGridSpec(
            num_scalar_prefetch=0,
            grid=grid,
            in_specs=[
                pl.BlockSpec((1, C_in, tile_p), lambda n, p: (n, 0, p)),
                full(w1), full(b1),
                full(w2), full(b2),
                full(w3), full(b3),
            ],
            out_specs=pl.BlockSpec((1, C3, tile_p), lambda n, p: (n, 0, p)),
        ),
        compiler_params=pltpu.CompilerParams(
            dimension_semantics=("parallel", "parallel"),
            vmem_limit_bytes=int(vmem_limit)),
    )(x_flat, w1, b1, w2, b2, w3, b3)

    if HW_pad != HW:
        out_flat = out_flat[:, :, :HW]
    return out_flat.reshape(N, C3, H, W)


def init_params(key, channel_in):
    """Deterministic synthetic init matching the PyTorch module's shapes."""
    channel_mid = channel_in // 4
    c1 = channel_mid * 10 // 3
    c2 = channel_mid * 8 // 3
    c3 = channel_mid * 2

    def conv_init(k, cin, cout):
        kw, kb = jax.random.split(k)
        bound = 1.0 / jnp.sqrt(cin)
        # native PyTorch 1x1-conv orientation: weight (C_out, C_in), bias (C_out, 1)
        w = jax.random.uniform(kw, (cout, cin), jnp.float32, -bound, bound)
        b = jax.random.uniform(kb, (cout, 1), jnp.float32, -bound, bound)
        return w, b

    k1, k2, k3 = jax.random.split(key, 3)
    w1, b1 = conv_init(k1, channel_in, c1)
    w2, b2 = conv_init(k2, c1, c2)
    w3, b3 = conv_init(k3, c2, c3)
    return {"w1": w1, "b1": b1, "w2": w2, "b2": b2, "w3": w3, "b3": b3}


def _reference(x_nchw, params):
    # Pure-JAX reference of the PyTorch forward (1x1 convs == channel matmuls).
    N, C, H, W = x_nchw.shape
    h = x_nchw.reshape(N, C, H * W)

    def lin(w, b, t):
        return jnp.einsum("oc,ncp->nop", w, t) + b[None, :, :]

    h = lin(params["w1"], params["b1"], h)
    h = jnp.where(h > 0, h, LEAKY_SLOPE * h)
    h = lin(params["w2"], params["b2"], h)
    h = jnp.where(h > 0, h, LEAKY_SLOPE * h)
    h = lin(params["w3"], params["b3"], h)
    C3 = h.shape[1]
    return h.reshape(N, C3, H, W)


if __name__ == "__main__":
    key = jax.random.PRNGKey(0)
    kx, kp = jax.random.split(key)

    # Small shapes: batch=2, channel_in=12, spatial=16 -> channels 10 -> 8 -> 6
    N, C_in, H, W = 2, 12, 16, 16
    x = jax.random.normal(kx, (N, C_in, H, W), jnp.float32)
    params = init_params(kp, C_in)

    out = entropy_parameters_pallas(x, params)
    out = jax.block_until_ready(out)

    ref = _reference(x, params)
    assert out.shape == ref.shape, (out.shape, ref.shape)
    assert jnp.allclose(out, ref, atol=1e-4, rtol=1e-4), "mismatch vs reference"

    print("KERNEL_OK")
</pallas_src>

<mosaic_0001>
module attributes {stable_mosaic.version = 11 : i64} {
  func.func @_entropy_params_kernel(%arg0: i32, %arg1: i32, %arg2: memref<1x12x256xf32, #tpu.memory_space<vmem>>, %arg3: memref<10x12xf32, #tpu.memory_space<vmem>>, %arg4: memref<10x1xf32, #tpu.memory_space<vmem>>, %arg5: memref<8x10xf32, #tpu.memory_space<vmem>>, %arg6: memref<8x1xf32, #tpu.memory_space<vmem>>, %arg7: memref<6x8xf32, #tpu.memory_space<vmem>>, %arg8: memref<6x1xf32, #tpu.memory_space<vmem>>, %arg9: memref<1x6x256xf32, #tpu.memory_space<vmem>>) attributes {dimension_semantics = [#tpu.dimension_semantics<parallel>, #tpu.dimension_semantics<parallel>], iteration_bounds = array<i64: 2, 1>, scalar_prefetch = 0 : i64, scratch_operands = 0 : i64, tpu.core_type = #tpu.core_type<tc>, window_params = [{transform_indices = @transform_0, window_bounds = array<i64: 1, 12, 256>}, {pipeline_mode = #tpu.pipeline_mode<synchronous>, transform_indices = @transform_1, window_bounds = array<i64: 10, 12>}, {pipeline_mode = #tpu.pipeline_mode<synchronous>, transform_indices = @transform_2, window_bounds = array<i64: 10, 1>}, {pipeline_mode = #tpu.pipeline_mode<synchronous>, transform_indices = @transform_3, window_bounds = array<i64: 8, 10>}, {pipeline_mode = #tpu.pipeline_mode<synchronous>, transform_indices = @transform_4, window_bounds = array<i64: 8, 1>}, {pipeline_mode = #tpu.pipeline_mode<synchronous>, transform_indices = @transform_5, window_bounds = array<i64: 6, 8>}, {pipeline_mode = #tpu.pipeline_mode<synchronous>, transform_indices = @transform_6, window_bounds = array<i64: 6, 1>}, {transform_indices = @transform_7, window_bounds = array<i64: 1, 6, 256>}]} {
    %c0 = arith.constant 0 : index
    %c0_0 = arith.constant 0 : index
    %c0_1 = arith.constant 0 : index
    %0 = vector.load %arg2[%c0, %c0_0, %c0_1] : memref<1x12x256xf32, #tpu.memory_space<vmem>>, vector<1x12x256xf32>
    %1 = vector.shape_cast %0 : vector<1x12x256xf32> to vector<12x256xf32>
    %c0_2 = arith.constant 0 : index
    %c0_3 = arith.constant 0 : index
    %2 = vector.load %arg3[%c0_2, %c0_3] : memref<10x12xf32, #tpu.memory_space<vmem>>, vector<10x12xf32>
    %cst = arith.constant dense<0.000000e+00> : vector<10x256xf32>
    %3 = tpu.matmul %2, %1, %cst {dimension_numbers = #tpu.dot_dimension_numbers<[1], [0], [0], [1], [0, 0, 1, 1], [], []>} : vector<10x12xf32>, vector<12x256xf32>, vector<10x256xf32> -> vector<10x256xf32>
    %c0_4 = arith.constant 0 : index
    %c0_5 = arith.constant 0 : index
    %4 = vector.load %arg4[%c0_4, %c0_5] : memref<10x1xf32, #tpu.memory_space<vmem>>, vector<10x1xf32>
    %5 = vector.broadcast %4 : vector<10x1xf32> to vector<10x256xf32>
    %6 = arith.addf %3, %5 : vector<10x256xf32>
    %cst_6 = arith.constant 0.000000e+00 : f32
    %7 = vector.broadcast %cst_6 : f32 to vector<10x256xf32>
    %8 = arith.cmpf ogt, %6, %7 : vector<10x256xf32>
    %cst_7 = arith.constant 0.00999999977 : f32
    %9 = vector.broadcast %cst_7 : f32 to vector<10x256xf32>
    %10 = arith.mulf %9, %6 : vector<10x256xf32>
    %11 = arith.select %8, %6, %10 : vector<10x256xi1>, vector<10x256xf32>
    %c0_8 = arith.constant 0 : index
    %c0_9 = arith.constant 0 : index
    %12 = vector.load %arg5[%c0_8, %c0_9] : memref<8x10xf32, #tpu.memory_space<vmem>>, vector<8x10xf32>
    %cst_10 = arith.constant dense<0.000000e+00> : vector<8x256xf32>
    %13 = tpu.matmul %12, %11, %cst_10 {dimension_numbers = #tpu.dot_dimension_numbers<[1], [0], [0], [1], [0, 0, 1, 1], [], []>} : vector<8x10xf32>, vector<10x256xf32>, vector<8x256xf32> -> vector<8x256xf32>
    %c0_11 = arith.constant 0 : index
    %c0_12 = arith.constant 0 : index
    %14 = vector.load %arg6[%c0_11, %c0_12] : memref<8x1xf32, #tpu.memory_space<vmem>>, vector<8x1xf32>
    %15 = vector.broadcast %14 : vector<8x1xf32> to vector<8x256xf32>
    %16 = arith.addf %13, %15 : vector<8x256xf32>
    %cst_13 = arith.constant 0.000000e+00 : f32
    %17 = vector.broadcast %cst_13 : f32 to vector<8x256xf32>
    %18 = arith.cmpf ogt, %16, %17 : vector<8x256xf32>
    %cst_14 = arith.constant 0.00999999977 : f32
    %19 = vector.broadcast %cst_14 : f32 to vector<8x256xf32>
    %20 = arith.mulf %19, %16 : vector<8x256xf32>
    %21 = arith.select %18, %16, %20 : vector<8x256xi1>, vector<8x256xf32>
    %c0_15 = arith.constant 0 : index
    %c0_16 = arith.constant 0 : index
    %22 = vector.load %arg7[%c0_15, %c0_16] : memref<6x8xf32, #tpu.memory_space<vmem>>, vector<6x8xf32>
    %cst_17 = arith.constant dense<0.000000e+00> : vector<6x256xf32>
    %23 = tpu.matmul %22, %21, %cst_17 {dimension_numbers = #tpu.dot_dimension_numbers<[1], [0], [0], [1], [0, 0, 1, 1], [], []>} : vector<6x8xf32>, vector<8x256xf32>, vector<6x256xf32> -> vector<6x256xf32>
    %c0_18 = arith.constant 0 : index
    %c0_19 = arith.constant 0 : index
    %24 = vector.load %arg8[%c0_18, %c0_19] : memref<6x1xf32, #tpu.memory_space<vmem>>, vector<6x1xf32>
    %25 = vector.broadcast %24 : vector<6x1xf32> to vector<6x256xf32>
    %26 = arith.addf %23, %25 : vector<6x256xf32>
    %c0_20 = arith.constant 0 : index
    %c0_21 = arith.constant 0 : index
    %c0_22 = arith.constant 0 : index
    %27 = vector.load %arg9[%c0_20, %c0_21, %c0_22] : memref<1x6x256xf32, #tpu.memory_space<vmem>>, vector<1x6x256xf32>
    %28 = vector.shape_cast %27 : vector<1x6x256xf32> to vector<6x256xf32>
    %29 = vector.shape_cast %26 : vector<6x256xf32> to vector<1x6x256xf32>
    tpu.vector_store %arg9[%c0_20, %c0_21, %c0_22], %29 {strides = array<i32>} : memref<1x6x256xf32, #tpu.memory_space<vmem>>, vector<1x6x256xf32>,
    return
  }
  func.func @transform_0(%arg0: i32, %arg1: i32) -> (i32, i32, i32) {
    %c0_i32 = arith.constant 0 : i32
    %c0_i32_0 = arith.constant 0 : i32
    return %arg0, %c0_i32, %arg1 : i32, i32, i32
  }
  func.func @transform_1(%arg0: i32, %arg1: i32) -> (i32, i32) {
    %c0_i32 = arith.constant 0 : i32
    %c0_i32_0 = arith.constant 0 : i32
    %c0_i32_1 = arith.constant 0 : i32
    return %c0_i32, %c0_i32_0 : i32, i32
  }
  func.func @transform_2(%arg0: i32, %arg1: i32) -> (i32, i32) {
    %c0_i32 = arith.constant 0 : i32
    %c0_i32_0 = arith.constant 0 : i32
    %c0_i32_1 = arith.constant 0 : i32
    return %c0_i32, %c0_i32_0 : i32, i32
  }
  func.func @transform_3(%arg0: i32, %arg1: i32) -> (i32, i32) {
    %c0_i32 = arith.constant 0 : i32
    %c0_i32_0 = arith.constant 0 : i32
    %c0_i32_1 = arith.constant 0 : i32
    return %c0_i32, %c0_i32_0 : i32, i32
  }
  func.func @transform_4(%arg0: i32, %arg1: i32) -> (i32, i32) {
    %c0_i32 = arith.constant 0 : i32
    %c0_i32_0 = arith.constant 0 : i32
    %c0_i32_1 = arith.constant 0 : i32
    return %c0_i32, %c0_i32_0 : i32, i32
  }
  func.func @transform_5(%arg0: i32, %arg1: i32) -> (i32, i32) {
    %c0_i32 = arith.constant 0 : i32
    %c0_i32_0 = arith.constant 0 : i32
    %c0_i32_1 = arith.constant 0 : i32
    return %c0_i32, %c0_i32_0 : i32, i32
  }
  func.func @transform_6(%arg0: i32, %arg1: i32) -> (i32, i32) {
    %c0_i32 = arith.constant 0 : i32
    %c0_i32_0 = arith.constant 0 : i32
    %c0_i32_1 = arith.constant 0 : i32
    return %c0_i32, %c0_i32_0 : i32, i32
  }
  func.func @transform_7(%arg0: i32, %arg1: i32) -> (i32, i32, i32) {
    %c0_i32 = arith.constant 0 : i32
    %c0_i32_0 = arith.constant 0 : i32
    return %arg0, %c0_i32, %arg1 : i32, i32, i32
  }
}

</mosaic_0001>

<llo_original>
// kernel: tpu_custom_call.1
$region0: #{tpu_custom_call.1}
  #allocation0 [shape = 'u32[]', space=smem, size = 0x4, offset = 0x4, fixed_abs, tag = 'smem constant byte address 0x4 - core index']
  #allocation1 [shape = 'u32[144,128]{1,0:T(1,128)}', space=vmem, size = 0x12000, scoped, tag = 'internal scratch']
  %s0 = inlined_call_operand.vmem [shape: f32[2,12,256], index: 0, kind: input, shape index: {}]
  %s1 = inlined_call_operand.vmem [shape: f32[10,12], index: 1, kind: input, shape index: {}]
  %s2 = inlined_call_operand.vmem [shape: f32[10,1], index: 2, kind: input, shape index: {}]
  %s3 = inlined_call_operand.vmem [shape: f32[8,10], index: 3, kind: input, shape index: {}]
  %s4 = inlined_call_operand.vmem [shape: f32[8,1], index: 4, kind: input, shape index: {}]
  %s5 = inlined_call_operand.vmem [shape: f32[6,8], index: 5, kind: input, shape index: {}]
  %s6 = inlined_call_operand.vmem [shape: f32[6,1], index: 6, kind: input, shape index: {}]
  %s7 = inlined_call_operand.vmem [shape: f32[2,6,256], index: 7, kind: output, shape index: {}]
  %s8 = sld [smem:[#allocation0]]
  $region61: #{tpu_custom_call.1} parent=0
    _
  %s10 = ssub.s32 1, %s8
  %s11 = scalar_select 0, %s10, %s8
  loop: start=0, step=1, limit=4
  $region2: #{tpu_custom_call.1} parent=0 // loop_pre_header
    _
  $region3: #{tpu_custom_call.1} parent=0 // loop_header
    %s13 = sphi 0, %s17
    %p14 = scmp.ge.s32.totalorder %s13, 4
    %s20 = sphi 0, %s32
    %s21 = sphi 0, %s28
    %s22 = sphi 0, %s20
    %s23 = sphi 0, %s21
    %s24 = sphi 0, %s22
    %s25 = sphi 0, %s23
    %s37 = sphi 0, %s39
    %s40 = sphi 0, %s37
    %s41 = sphi 0, %s40
    %s57 = sphi 0, %s41
    %s61 = sphi 0, %s61
    %s63 = sphi 0, %s61
    %s64 = sphi 0, %s63
    %s78 = sphi 0, %s64
    %s82 = sphi 0, %s82
    %s84 = sphi 0, %s82
    %s85 = sphi 0, %s84
    %s99 = sphi 0, %s85
    %s103 = sphi 0, %s103
    %s105 = sphi 0, %s103
    %s106 = sphi 0, %s105
    %s120 = sphi 0, %s106
    %s124 = sphi 0, %s124
    %s126 = sphi 0, %s124
    %s127 = sphi 0, %s126
    %s141 = sphi 0, %s127
    %s145 = sphi 0, %s145
    %s147 = sphi 0, %s145
    %s148 = sphi 0, %s147
    %s162 = sphi 0, %s148
    %s166 = sphi 0, %s166
    %s168 = sphi 0, %s166
    %s169 = sphi 0, %s168
    %s183 = sphi 0, %s169
    %s191 = sphi 0, %s193
    %s194 = sphi 0, %s191
    %s195 = sphi 0, %s194
    %s211 = sphi 0, %s195
  $region4: #{tpu_custom_call.1} parent=0 // loop_header_branch
    %16 = sbr.rel (%p14) target = $region8
  $region5: #{tpu_custom_call.1} parent=0 // loop_body
    %s18 = ssub.s32 %s13, 1
    %s19 = ssub.s32 %s13, 2
    %s26 = sadd.s32 1, %s21
    %p27 = scmp.ge.s32.totalorder %s26, 1
    %s28 = scalar_select %p27, 0, %s26
    %s29 = sadd.s32 1, %s20
    %s30 = scalar_select %p27, %s29, %s20
    %p31 = scmp.ge.s32.totalorder %s30, 2
    %s32 = scalar_select %p31, 0, %s30
    %s33 = ssub.s32 %s20, %s32
    %s34 = ssub.s32 %s21, %s28
    %s35 = sor.u32 %s33, %s34
    %p36 = scmp.eq.s32.totalorder %s35, 0
    %s38 = sadd.s32 %s37, 1
    %s39 = scalar_select %p36, %s37, %s38
    %p42 = pneg %p36
    %p43 = scmp.eq.s32.totalorder %s13, 1
    %p44 = por %p42, %p43
    %p45 = scmp.ne.s32.totalorder %s37, %s40
    %p46 = scmp.eq.s32.totalorder %s13, 0
    %p47 = por %p45, %p46
    %p48 = scmp.ne.s32.totalorder %s37, %s40
    %p49 = scmp.eq.s32.totalorder %s18, 1
    %p50 = por %p48, %p49
    %p51 = scmp.ne.s32.totalorder %s40, %s41
    %p52 = scmp.eq.s32.totalorder %s18, 0
    %p53 = por %p51, %p52
    %p54 = scmp.ne.s32.totalorder %s40, %s41
    %p55 = scmp.eq.s32.totalorder %s19, 1
    %p56 = por %p54, %p55
    %p58 = scmp.ne.s32.totalorder %s41, %s57
    %p59 = scmp.eq.s32.totalorder %s19, 0
    %p60 = por %p58, %p59
    %s62 = sadd.s32 %s61, 1
    %p65 = scmp.eq.s32.totalorder %s13, 1
    %p66 = scmp.ne.s32.totalorder %s61, %s63
    %p67 = scmp.eq.s32.totalorder %s13, 0
    %p68 = por %p66, %p67
    %p69 = scmp.ne.s32.totalorder %s61, %s63
    %p70 = scmp.eq.s32.totalorder %s18, 1
    %p71 = por %p69, %p70
    %p72 = scmp.ne.s32.totalorder %s63, %s64
    %p73 = scmp.eq.s32.totalorder %s18, 0
    %p74 = por %p72, %p73
    %p75 = scmp.ne.s32.totalorder %s63, %s64
    %p76 = scmp.eq.s32.totalorder %s19, 1
    %p77 = por %p75, %p76
    %p79 = scmp.ne.s32.totalorder %s64, %s78
    %p80 = scmp.eq.s32.totalorder %s19, 0
    %p81 = por %p79, %p80
    %s83 = sadd.s32 %s82, 1
    %p86 = scmp.eq.s32.totalorder %s13, 1
    %p87 = scmp.ne.s32.totalorder %s82, %s84
    %p88 = scmp.eq.s32.totalorder %s13, 0
    %p89 = por %p87, %p88
    %p90 = scmp.ne.s32.totalorder %s82, %s84
    %p91 = scmp.eq.s32.totalorder %s18, 1
    %p92 = por %p90, %p91
    %p93 = scmp.ne.s32.totalorder %s84, %s85
    %p94 = scmp.eq.s32.totalorder %s18, 0
    %p95 = por %p93, %p94
    %p96 = scmp.ne.s32.totalorder %s84, %s85
    %p97 = scmp.eq.s32.totalorder %s19, 1
    %p98 = por %p96, %p97
    %p100 = scmp.ne.s32.totalorder %s85, %s99
    %p101 = scmp.eq.s32.totalorder %s19, 0
    %p102 = por %p100, %p101
    %s104 = sadd.s32 %s103, 1
    %p107 = scmp.eq.s32.totalorder %s13, 1
    %p108 = scmp.ne.s32.totalorder %s103, %s105
    %p109 = scmp.eq.s32.totalorder %s13, 0
    %p110 = por %p108, %p109
    %p111 = scmp.ne.s32.totalorder %s103, %s105
    %p112 = scmp.eq.s32.totalorder %s18, 1
    %p113 = por %p111, %p112
    %p114 = scmp.ne.s32.totalorder %s105, %s106
    %p115 = scmp.eq.s32.totalorder %s18, 0
    %p116 = por %p114, %p115
    %p117 = scmp.ne.s32.totalorder %s105, %s106
    %p118 = scmp.eq.s32.totalorder %s19, 1
    %p119 = por %p117, %p118
    %p121 = scmp.ne.s32.totalorder %s106, %s120
    %p122 = scmp.eq.s32.totalorder %s19, 0
    %p123 = por %p121, %p122
    %s125 = sadd.s32 %s124, 1
    %p128 = scmp.eq.s32.totalorder %s13, 1
    %p129 = scmp.ne.s32.totalorder %s124, %s126
    %p130 = scmp.eq.s32.totalorder %s13, 0
    %p131 = por %p129, %p130
    %p132 = scmp.ne.s32.totalorder %s124, %s126
    %p133 = scmp.eq.s32.totalorder %s18, 1
    %p134 = por %p132, %p133
    %p135 = scmp.ne.s32.totalorder %s126, %s127
    %p136 = scmp.eq.s32.totalorder %s18, 0
    %p137 = por %p135, %p136
    %p138 = scmp.ne.s32.totalorder %s126, %s127
    %p139 = scmp.eq.s32.totalorder %s19, 1
    %p140 = por %p138, %p139
    %p142 = scmp.ne.s32.totalorder %s127, %s141
    %p143 = scmp.eq.s32.totalorder %s19, 0
    %p144 = por %p142, %p143
    %s146 = sadd.s32 %s145, 1
    %p149 = scmp.eq.s32.totalorder %s13, 1
    %p150 = scmp.ne.s32.totalorder %s145, %s147
    %p151 = scmp.eq.s32.totalorder %s13, 0
    %p152 = por %p150, %p151
    %p153 = scmp.ne.s32.totalorder %s145, %s147
    %p154 = scmp.eq.s32.totalorder %s18, 1
    %p155 = por %p153, %p154
    %p156 = scmp.ne.s32.totalorder %s147, %s148
    %p157 = scmp.eq.s32.totalorder %s18, 0
    %p158 = por %p156, %p157
    %p159 = scmp.ne.s32.totalorder %s147, %s148
    %p160 = scmp.eq.s32.totalorder %s19, 1
    %p161 = por %p159, %p160
    %p163 = scmp.ne.s32.totalorder %s148, %s162
    %p164 = scmp.eq.s32.totalorder %s19, 0
    %p165 = por %p163, %p164
    %s167 = sadd.s32 %s166, 1
    %p170 = scmp.eq.s32.totalorder %s13, 1
    %p171 = scmp.ne.s32.totalorder %s166, %s168
    %p172 = scmp.eq.s32.totalorder %s13, 0
    %p173 = por %p171, %p172
    %p174 = scmp.ne.s32.totalorder %s166, %s168
    %p175 = scmp.eq.s32.totalorder %s18, 1
    %p176 = por %p174, %p175
    %p177 = scmp.ne.s32.totalorder %s168, %s169
    %p178 = scmp.eq.s32.totalorder %s18, 0
    %p179 = por %p177, %p178
    %p180 = scmp.ne.s32.totalorder %s168, %s169
    %p181 = scmp.eq.s32.totalorder %s19, 1
    %p182 = por %p180, %p181
    %p184 = scmp.ne.s32.totalorder %s169, %s183
    %p185 = scmp.eq.s32.totalorder %s19, 0
    %p186 = por %p184, %p185
    %s187 = ssub.s32 %s20, %s32
    %s188 = ssub.s32 %s21, %s28
    %s189 = sor.u32 %s187, %s188
    %p190 = scmp.eq.s32.totalorder %s189, 0
    %s192 = sadd.s32 %s191, 1
    %s193 = scalar_select %p190, %s191, %s192
    %p196 = pneg %p190
    %p197 = scmp.eq.s32.totalorder %s13, 1
    %p198 = por %p196, %p197
    %p199 = scmp.ne.s32.totalorder %s191, %s194
    %p200 = scmp.eq.s32.totalorder %s13, 0
    %p201 = por %p199, %p200
    %p202 = scmp.ne.s32.totalorder %s191, %s194
    %p203 = scmp.eq.s32.totalorder %s18, 1
    %p204 = por %p202, %p203
    %p205 = scmp.ne.s32.totalorder %s194, %s195
    %p206 = scmp.eq.s32.totalorder %s18, 0
    %p207 = por %p205, %p206
    %p208 = scmp.ne.s32.totalorder %s194, %s195
    %p209 = scmp.eq.s32.totalorder %s19, 1
    %p210 = por %p208, %p209
    %p212 = scmp.ne.s32.totalorder %s195, %s211
    %p213 = scmp.eq.s32.totalorder %s19, 0
    %p214 = por %p212, %p213
    %p215 = scmp.le.s32.totalorder 1, %s13
    %p216 = scmp.lt.s32.totalorder %s13, 3
    %p217 = pnand %p215, %p216
    %p218 = pneg %p217
    // Predicated region
    $region9: #{tpu_custom_call.1} parent=5 // pred_check
      _
    $region10: #{tpu_custom_call.1} parent=5 // pred_check_branch
      %220 = sbr.rel (%p217) target = $region12
    $region11: #{tpu_custom_call.1} parent=5 // pred_region
      %s221 = ssub.s32 %s13, 1
      // Predicated region
      $region13: #{tpu_custom_call.1} parent=11 // pred_check
        %p222 = pneg %p74
      $region14: #{tpu_custom_call.1} parent=11 // pred_check_branch
        %224 = sbr.rel (%p222) target = $region16
      $region15: #{tpu_custom_call.1} parent=11 // pred_region
        _
      $region16: #{tpu_custom_call.1} parent=11 // pred_fallthru
        _
      // Predicated region
      $region17: #{tpu_custom_call.1} parent=11 // pred_check
        %p225 = pneg %p95
      $region18: #{tpu_custom_call.1} parent=11 // pred_check_branch
        %227 = sbr.rel (%p225) target = $region20
      $region19: #{tpu_custom_call.1} parent=11 // pred_region
        _
      $region20: #{tpu_custom_call.1} parent=11 // pred_fallthru
        _
      // Predicated region
      $region21: #{tpu_custom_call.1} parent=11 // pred_check
        %p228 = pneg %p116
      $region22: #{tpu_custom_call.1} parent=11 // pred_check_branch
        %230 = sbr.rel (%p228) target = $region24
      $region23: #{tpu_custom_call.1} parent=11 // pred_region
        _
      $region24: #{tpu_custom_call.1} parent=11 // pred_fallthru
        _
      // Predicated region
      $region25: #{tpu_custom_call.1} parent=11 // pred_check
        %p231 = pneg %p137
      $region26: #{tpu_custom_call.1} parent=11 // pred_check_branch
        %233 = sbr.rel (%p231) target = $region28
      $region27: #{tpu_custom_call.1} parent=11 // pred_region
        _
      $region28: #{tpu_custom_call.1} parent=11 // pred_fallthru
        _
      // Predicated region
      $region29: #{tpu_custom_call.1} parent=11 // pred_check
        %p234 = pneg %p158
      $region30: #{tpu_custom_call.1} parent=11 // pred_check_branch
        %236 = sbr.rel (%p234) target = $region32
      $region31: #{tpu_custom_call.1} parent=11 // pred_region
        _
      $region32: #{tpu_custom_call.1} parent=11 // pred_fallthru
        _
      // Predicated region
      $region33: #{tpu_custom_call.1} parent=11 // pred_check
        %p237 = pneg %p179
      $region34: #{tpu_custom_call.1} parent=11 // pred_check_branch
        %239 = sbr.rel (%p237) target = $region36
      $region35: #{tpu_custom_call.1} parent=11 // pred_region
        _
      $region36: #{tpu_custom_call.1} parent=11 // pred_fallthru
        _
    $region12: #{tpu_custom_call.1} parent=5 // pred_fallthru
      _
    %p240 = scmp.lt.s32.totalorder %s13, 2
    // Predicated region
    $region37: #{tpu_custom_call.1} parent=5 // pred_check
      %p241 = pneg %p240
    $region38: #{tpu_custom_call.1} parent=5 // pred_check_branch
      %243 = sbr.rel (%p241) target = $region40
    $region39: #{tpu_custom_call.1} parent=5 // pred_region
      // Predicated region
      $region41: #{tpu_custom_call.1} parent=39 // pred_check
        %p244 = pneg %p47
      $region42: #{tpu_custom_call.1} parent=39 // pred_check_branch
        %246 = sbr.rel (%p244) target = $region44
      $region43: #{tpu_custom_call.1} parent=39 // pred_region
        %s247 = smul.u32 2, %s21
        %p248 = scmp.lt.s32.totalorder %s20, 1
        %s249 = scalar_select %p248, %s20, 1
        %p250 = scmp.lt.s32.totalorder %s247, 1
        %s251 = scalar_select %p250, %s247, 1
        %s252 = smul.addr %s249, 4
        %s253 = sadd.s32 %s251, %s252
        %s254 = smul.addr %s253, 8
        %s255 = scalar_lea.vmem %s0, %s254
        %s256 = smul.u32 2, %s21
      $region44: #{tpu_custom_call.1} parent=39 // pred_fallthru
        _
    $region40: #{tpu_custom_call.1} parent=5 // pred_fallthru
      _
    %p257 = scmp.le.s32.totalorder 1, %s13
    %p258 = scmp.lt.s32.totalorder %s13, 3
    %p259 = pnand %p257, %p258
    %p260 = pneg %p259
    // Predicated region
    $region45: #{tpu_custom_call.1} parent=5 // pred_check
      _
    $region46: #{tpu_custom_call.1} parent=5 // pred_check_branch
      %262 = sbr.rel (%p259) target = $region48
    $region47: #{tpu_custom_call.1} parent=5 // pred_region
      %s263 = ssub.s32 %s13, 1
      %s264 = smul.u32 2, %s23
      %p265 = scmp.lt.s32.totalorder %s22, 1
      %s266 = scalar_select %p265, %s22, 1
      %p267 = scmp.lt.s32.totalorder %s264, 1
      %s268 = scalar_select %p267, %s264, 1
      %s269 = smul.addr %s266, 4
      %s270 = sadd.s32 %s268, %s269
      %s271 = smul.addr %s270, 8
      %s272 = scalar_lea.vmem %s0, %s271
      %p273 = pneg %p53
      %p274 = pneg %p50
      %p275 = pneg %p74
      %p276 = pneg %p71
      %p277 = pneg %p95
      %p278 = pneg %p92
      %p279 = pneg %p116
      %p280 = pneg %p113
      %p281 = pneg %p137
      %p282 = pneg %p134
      %p283 = pneg %p158
      %p284 = pneg %p155
      %p285 = pneg %p179
      %p286 = pneg %p176
      %p287 = pneg %p207
      %p288 = pneg %p204
      %s289 = smul.u32 2, %s23
      %p290 = scmp.lt.s32.totalorder %s22, 1
      %s291 = scalar_select %p290, %s22, 1
      %p292 = scmp.lt.s32.totalorder %s289, 1
      %s293 = scalar_select %p292, %s289, 1
      %s294 = smul.addr %s291, 2
      %s295 = sadd.s32 %s293, %s294
      %s296 = smul.addr %s295, 8
      %s297 = scalar_lea.vmem %s7, %s296
      %s298 = smul.u32 2, %s23
      %p299 = scmp.lt.s32.totalorder %s22, 1
      %s300 = scalar_select %p299, %s22, 1
      %p301 = scmp.lt.s32.totalorder %s298, 1
      %s302 = scalar_select %p301, %s298, 1
      %s303 = smul.addr %s300, 4
      %s304 = sadd.s32 %s302, %s303
      %s305 = smul.addr %s304, 8
      %s306 = scalar_lea.vmem %s0, %s305
      %s307 = smul.u32 2, %s23
      %s308 = smul.u32 2, %s23
      %p309 = scmp.lt.s32.totalorder %s22, 1
      %s310 = scalar_select %p309, %s22, 1
      %p311 = scmp.lt.s32.totalorder %s308, 1
      %s312 = scalar_select %p311, %s308, 1
      %s313 = smul.addr %s310, 2
      %s314 = sadd.s32 %s312, %s313
      %s315 = smul.addr %s314, 8
      %s316 = scalar_lea.vmem %s7, %s315
      %s317 = smul.u32 2, %s23
      %v318 = vld [vmem:[%s306] sm:$0xff]
      %v319 = vld [vmem:[%s306 + $0x8] sm:$0xff]
      %v320 = vld [vmem:[%s306 + $0x10] sm:$0xf]
      %v321 = vld [vmem:[%s306 + $0x18] sm:$0xf]
      %v322 = vld [vmem:[%s1] sm:$0xff]
      %v323 = vld [vmem:[%s1 + $0x8] sm:$0x3]
      %v324 = vld [vmem:[%s2] sm:$0xff]
      %v325 = vld [vmem:[%s2 + $0x8] sm:$0x3]
      %327 = vset.pattern.permute.xlu0 0
      %328 = vperm.xlu0 %327, %v324
      %v329 = vpop.permute.xlu0 %328
      %332 = vset.pattern.permute.xlu0 0
      %333 = vperm.xlu0 %332, %v325
      %v334 = vpop.permute.xlu0 %333
      %vm336 = vcmask 97280
      %v338 = vsel %vm336, %v322, 0
      %v341 = vsel %vm336, %v323, 0
      %vm343 = vcmask 1043456
      %v345 = vsel %vm343, %v320, 0
      %v348 = vsel %vm343, %v321, 0
      %350 = vmatprep.subr.mxu0 0.0
      %351 = vmatpush1.msra.mxu0 0.0
      %352 = vmatprep.subr.mxu0 0.0
      %353 = vmatpush1.msra.mxu0 0.0
      %354 = vmatprep.subr.mxu0 0.0
      %355 = vmatpush1.msra.mxu0 0.0
      %356 = vmatprep.subr.mxu0 0.0
      %357 = vmatpush1.msra.mxu0 0.0
      %358 = vmatprep.subr.mxu0 0.0
      %359 = vmatpush1.msra.mxu0 0.0
      %360 = vmatprep.subr.mxu0 0.0
      %361 = vmatpush1.msra.mxu0 0.0
      %362 = vmatprep.subr.mxu0 0.0
      %363 = vmatpush1.msra.mxu0 0.0
      %364 = vmatprep.subr.mxu0 0.0
      %365 = vmatpush1.msra.mxu0 0.0
      %366 = vmatprep.subr.mxu0 0.0
      %367 = vmatpush1.msra.mxu0 0.0
      %368 = vmatprep.subr.mxu0 0.0
      %369 = vmatpush1.msra.mxu0 0.0
      %370 = vmatprep.subr.mxu0 0.0
      %371 = vmatpush1.msra.mxu0 0.0
      %372 = vmatprep.subr.mxu0 0.0
      %373 = vmatpush1.msra.mxu0 0.0
      %374 = vmatprep.subr.mxu0 0.0
      %375 = vmatpush1.msra.mxu0 0.0
      %376 = vmatprep.subr.mxu0 0.0
      %377 = vmatpush1.msra.mxu0 0.0
      %378 = vmatprep.subr.mxu0 %v348
      %379 = vmatpush1.msra.mxu0 %v345
      %380 = vmatprep.subr.mxu0 %v319
      %381 = vmatpush1.msra.mxu0 %v318
      %382 = vmatprep.subr.mxu0 0.0
      %383 = vmatpush2.msra.mxu0 0.0
      %384 = vmatprep.subr.mxu0 0.0
      %385 = vmatpush2.msra.mxu0 0.0
      %386 = vmatprep.subr.mxu0 0.0
      %387 = vmatpush2.msra.mxu0 0.0
      %388 = vmatprep.subr.mxu0 0.0
      %389 = vmatpush2.msra.mxu0 0.0
      %390 = vmatprep.subr.mxu0 0.0
      %391 = vmatpush2.msra.mxu0 0.0
      %392 = vmatprep.subr.mxu0 0.0
      %393 = vmatpush2.msra.mxu0 0.0
      %394 = vmatprep.subr.mxu0 0.0
      %395 = vmatpush2.msra.mxu0 0.0
      %396 = vmatprep.subr.mxu0 0.0
      %397 = vmatpush2.msra.mxu0 0.0
      %398 = vmatprep.subr.mxu0 0.0
      %399 = vmatpush2.msra.mxu0 0.0
      %400 = vmatprep.subr.mxu0 0.0
      %401 = vmatpush2.msra.mxu0 0.0
      %402 = vmatprep.subr.mxu0 0.0
      %403 = vmatpush2.msra.mxu0 0.0
      %404 = vmatprep.subr.mxu0 0.0
      %405 = vmatpush2.msra.mxu0 0.0
      %406 = vmatprep.subr.mxu0 0.0
      %407 = vmatpush2.msra.mxu0 0.0
      %408 = vmatprep.subr.mxu0 0.0
      %409 = vmatpush2.msra.mxu0 0.0
      %410 = vmatprep.subr.mxu0 0.0
      %411 = vmatpush2.msra.mxu0 0.0
      %412 = vmatprep.subr.mxu0 0.0
      %413 = vmatpush2.msra.mxu0 0.0
      %414 = vmatprep.mubr.f32.mxu0 0.0
      %415 = vmatmul.mubr.f32.gmra.mxu0 %v338
      %v416 = vpop.f32.mrf.mxu0
      %v417 = vadd.f32 %v329, %v416
      %v418 = vpop.f32.mrf.mxu0
      %v419 = vadd.f32 %v329, %v418
      %420 = vmatprep.mubr.f32.mxu0 0.0
      %421 = vmatmul.mubr.f32.gmra.mxu0 %v341
      %v422 = vpop.f32.mrf.mxu0
      %v423 = vadd.f32 %v334, %v422
      %v424 = vpop.f32.mrf.mxu0
      %v425 = vadd.f32 %v334, %v424
      %426 = vdwg.mxu0
      %vm427 = vcmp.gt.f32.partialorder %v417, 0.0
      %vm428 = vcmp.gt.f32.partialorder %v419, 0.0
      %vm429 = vcmp.gt.f32.partialorder %v423, 0.0
      %vm430 = vcmp.gt.f32.partialorder %v425, 0.0
      %v431 = vmul.f32 %v417, 0.01
      %v432 = vmul.f32 %v419, 0.01
      %v433 = vmul.f32 %v423, 0.01
      %v434 = vmul.f32 %v425, 0.01
      %v435 = vsel %vm427, %v417, %v431
      %v436 = vsel %vm428, %v419, %v432
      %v437 = vsel %vm429, %v423, %v433
      %v438 = vsel %vm430, %v425, %v434
      %v439 = vld [vmem:[%s3] sm:$0xff]
      %v440 = vld [vmem:[%s4] sm:$0xff]
      %442 = vset.pattern.permute.xlu0 0
      %443 = vperm.xlu0 %442, %v440
      %v444 = vpop.permute.xlu0 %443
      %vm446 = vcmask 80896
      %v448 = vsel %vm446, %v439, 0
      %vm450 = vcmask 1041408
      %v452 = vsel %vm450, %v437, 0
      %v455 = vsel %vm450, %v438, 0
      %457 = vmatprep.subr.mxu0 0.0
      %458 = vmatpush1.msra.mxu0 0.0
      %459 = vmatprep.subr.mxu0 0.0
      %460 = vmatpush1.msra.mxu0 0.0
      %461 = vmatprep.subr.mxu0 0.0
      %462 = vmatpush1.msra.mxu0 0.0
      %463 = vmatprep.subr.mxu0 0.0
      %464 = vmatpush1.msra.mxu0 0.0
      %465 = vmatprep.subr.mxu0 0.0
      %466 = vmatpush1.msra.mxu0 0.0
      %467 = vmatprep.subr.mxu0 0.0
      %468 = vmatpush1.msra.mxu0 0.0
      %469 = vmatprep.subr.mxu0 0.0
      %470 = vmatpush1.msra.mxu0 0.0
      %471 = vmatprep.subr.mxu0 0.0
      %472 = vmatpush1.msra.mxu0 0.0
      %473 = vmatprep.subr.mxu0 0.0
      %474 = vmatpush1.msra.mxu0 0.0
      %475 = vmatprep.subr.mxu0 0.0
      %476 = vmatpush1.msra.mxu0 0.0
      %477 = vmatprep.subr.mxu0 0.0
      %478 = vmatpush1.msra.mxu0 0.0
      %479 = vmatprep.subr.mxu0 0.0
      %480 = vmatpush1.msra.mxu0 0.0
      %481 = vmatprep.subr.mxu0 0.0
      %482 = vmatpush1.msra.mxu0 0.0
      %483 = vmatprep.subr.mxu0 0.0
      %484 = vmatpush1.msra.mxu0 0.0
      %485 = vmatprep.subr.mxu0 %v455
      %486 = vmatpush1.msra.mxu0 %v452
      %487 = vmatprep.subr.mxu0 %v436
      %488 = vmatpush1.msra.mxu0 %v435
      %489 = vmatprep.subr.mxu0 0.0
      %490 = vmatpush2.msra.mxu0 0.0
      %491 = vmatprep.subr.mxu0 0.0
      %492 = vmatpush2.msra.mxu0 0.0
      %493 = vmatprep.subr.mxu0 0.0
      %494 = vmatpush2.msra.mxu0 0.0
      %495 = vmatprep.subr.mxu0 0.0
      %496 = vmatpush2.msra.mxu0 0.0
      %497 = vmatprep.subr.mxu0 0.0
      %498 = vmatpush2.msra.mxu0 0.0
      %499 = vmatprep.subr.mxu0 0.0
      %500 = vmatpush2.msra.mxu0 0.0
      %501 = vmatprep.subr.mxu0 0.0
      %502 = vmatpush2.msra.mxu0 0.0
      %503 = vmatprep.subr.mxu0 0.0
      %504 = vmatpush2.msra.mxu0 0.0
      %505 = vmatprep.subr.mxu0 0.0
      %506 = vmatpush2.msra.mxu0 0.0
      %507 = vmatprep.subr.mxu0 0.0
      %508 = vmatpush2.msra.mxu0 0.0
      %509 = vmatprep.subr.mxu0 0.0
      %510 = vmatpush2.msra.mxu0 0.0
      %511 = vmatprep.subr.mxu0 0.0
      %512 = vmatpush2.msra.mxu0 0.0
      %513 = vmatprep.subr.mxu0 0.0
      %514 = vmatpush2.msra.mxu0 0.0
      %515 = vmatprep.subr.mxu0 0.0
      %516 = vmatpush2.msra.mxu0 0.0
      %517 = vmatprep.subr.mxu0 0.0
      %518 = vmatpush2.msra.mxu0 0.0
      %519 = vmatprep.subr.mxu0 0.0
      %520 = vmatpush2.msra.mxu0 0.0
      %521 = vmatprep.mubr.f32.mxu0 0.0
      %522 = vmatmul.mubr.f32.gmra.mxu0 %v448
      %v523 = vpop.f32.mrf.mxu0
      %v524 = vadd.f32 %v444, %v523
      %v525 = vpop.f32.mrf.mxu0
      %v526 = vadd.f32 %v444, %v525
      %527 = vdwg.mxu0
      %vm528 = vcmp.gt.f32.partialorder %v524, 0.0
      %vm529 = vcmp.gt.f32.partialorder %v526, 0.0
      %v530 = vmul.f32 %v524, 0.01
      %v531 = vmul.f32 %v526, 0.01
      %v532 = vsel %vm528, %v524, %v530
      %v533 = vsel %vm529, %v526, %v531
      %v534 = vld [vmem:[%s5] sm:$0x3f]
      %v535 = vld [vmem:[%s6] sm:$0x3f]
      %537 = vset.pattern.permute.xlu0 0
      %538 = vperm.xlu0 %537, %v535
      %v539 = vpop.permute.xlu0 %538
      %vm541 = vcmask 64512
      %v543 = vsel %vm541, %v534, 0
      %545 = vmatprep.subr.mxu0 0.0
      %546 = vmatpush1.msra.mxu0 0.0
      %547 = vmatprep.subr.mxu0 0.0
      %548 = vmatpush1.msra.mxu0 0.0
      %549 = vmatprep.subr.mxu0 0.0
      %550 = vmatpush1.msra.mxu0 0.0
      %551 = vmatprep.subr.mxu0 0.0
      %552 = vmatpush1.msra.mxu0 0.0
      %553 = vmatprep.subr.mxu0 0.0
      %554 = vmatpush1.msra.mxu0 0.0
      %555 = vmatprep.subr.mxu0 0.0
      %556 = vmatpush1.msra.mxu0 0.0
      %557 = vmatprep.subr.mxu0 0.0
      %558 = vmatpush1.msra.mxu0 0.0
      %559 = vmatprep.subr.mxu0 0.0
      %560 = vmatpush1.msra.mxu0 0.0
      %561 = vmatprep.subr.mxu0 0.0
      %562 = vmatpush1.msra.mxu0 0.0
      %563 = vmatprep.subr.mxu0 0.0
      %564 = vmatpush1.msra.mxu0 0.0
      %565 = vmatprep.subr.mxu0 0.0
      %566 = vmatpush1.msra.mxu0 0.0
      %567 = vmatprep.subr.mxu0 0.0
      %568 = vmatpush1.msra.mxu0 0.0
      %569 = vmatprep.subr.mxu0 0.0
      %570 = vmatpush1.msra.mxu0 0.0
      %571 = vmatprep.subr.mxu0 0.0
      %572 = vmatpush1.msra.mxu0 0.0
      %573 = vmatprep.subr.mxu0 0.0
      %574 = vmatpush1.msra.mxu0 0.0
      %575 = vmatprep.subr.mxu0 %v533
      %576 = vmatpush1.msra.mxu0 %v532
      %577 = vmatprep.subr.mxu0 0.0
      %578 = vmatpush2.msra.mxu0 0.0
      %579 = vmatprep.subr.mxu0 0.0
      %580 = vmatpush2.msra.mxu0 0.0
      %581 = vmatprep.subr.mxu0 0.0
      %582 = vmatpush2.msra.mxu0 0.0
      %583 = vmatprep.subr.mxu0 0.0
      %584 = vmatpush2.msra.mxu0 0.0
      %585 = vmatprep.subr.mxu0 0.0
      %586 = vmatpush2.msra.mxu0 0.0
      %587 = vmatprep.subr.mxu0 0.0
      %588 = vmatpush2.msra.mxu0 0.0
      %589 = vmatprep.subr.mxu0 0.0
      %590 = vmatpush2.msra.mxu0 0.0
      %591 = vmatprep.subr.mxu0 0.0
      %592 = vmatpush2.msra.mxu0 0.0
      %593 = vmatprep.subr.mxu0 0.0
      %594 = vmatpush2.msra.mxu0 0.0
      %595 = vmatprep.subr.mxu0 0.0
      %596 = vmatpush2.msra.mxu0 0.0
      %597 = vmatprep.subr.mxu0 0.0
      %598 = vmatpush2.msra.mxu0 0.0
      %599 = vmatprep.subr.mxu0 0.0
      %600 = vmatpush2.msra.mxu0 0.0
      %601 = vmatprep.subr.mxu0 0.0
      %602 = vmatpush2.msra.mxu0 0.0
      %603 = vmatprep.subr.mxu0 0.0
      %604 = vmatpush2.msra.mxu0 0.0
      %605 = vmatprep.subr.mxu0 0.0
      %606 = vmatpush2.msra.mxu0 0.0
      %607 = vmatprep.subr.mxu0 0.0
      %608 = vmatpush2.msra.mxu0 0.0
      %609 = vmatprep.mubr.f32.mxu0 0.0
      %610 = vmatmul.mubr.f32.gmra.mxu0 %v543
      %v611 = vpop.f32.mrf.mxu0
      %v612 = vadd.f32 %v539, %v611
      %v613 = vpop.f32.mrf.mxu0
      %v614 = vadd.f32 %v539, %v613
      %615 = vdwg.mxu0
      %616 = vst [vmem:[%s316] sm:$0x3f] %v612
      %617 = vst [vmem:[%s316 + $0x8] sm:$0x3f] %v614
      %s618 = smul.u32 2, %s23
      %p619 = scmp.lt.s32.totalorder %s22, 1
      %s620 = scalar_select %p619, %s22, 1
      %p621 = scmp.lt.s32.totalorder %s618, 1
      %s622 = scalar_select %p621, %s618, 1
      %s623 = smul.addr %s620, 2
      %s624 = sadd.s32 %s622, %s623
      %s625 = smul.addr %s624, 8
      %s626 = scalar_lea.vmem %s7, %s625
      // Predicated region
      $region49: #{tpu_custom_call.1} parent=47 // pred_check
        %p627 = pneg %p204
      $region50: #{tpu_custom_call.1} parent=47 // pred_check_branch
        %629 = sbr.rel (%p627) target = $region52
      $region51: #{tpu_custom_call.1} parent=47 // pred_region
        %s630 = smul.u32 2, %s23
      $region52: #{tpu_custom_call.1} parent=47 // pred_fallthru
        _
    $region48: #{tpu_custom_call.1} parent=5 // pred_fallthru
      _
    %p631 = scmp.le.s32.totalorder 2, %s13
    // Predicated region
    $region53: #{tpu_custom_call.1} parent=5 // pred_check
      %p632 = pneg %p631
    $region54: #{tpu_custom_call.1} parent=5 // pred_check_branch
      %634 = sbr.rel (%p632) target = $region56
    $region55: #{tpu_custom_call.1} parent=5 // pred_region
      %s635 = ssub.s32 %s13, 2
      // Predicated region
      $region57: #{tpu_custom_call.1} parent=55 // pred_check
        %p636 = pneg %p210
      $region58: #{tpu_custom_call.1} parent=55 // pred_check_branch
        %638 = sbr.rel (%p636) target = $region60
      $region59: #{tpu_custom_call.1} parent=55 // pred_region
        %s639 = smul.u32 2, %s25
        %p640 = scmp.lt.s32.totalorder %s24, 1
        %s641 = scalar_select %p640, %s24, 1
        %p642 = scmp.lt.s32.totalorder %s639, 1
        %s643 = scalar_select %p642, %s639, 1
        %s644 = smul.addr %s641, 2
        %s645 = sadd.s32 %s643, %s644
        %s646 = smul.addr %s645, 8
        %s647 = scalar_lea.vmem %s7, %s646
      $region60: #{tpu_custom_call.1} parent=55 // pred_fallthru
        _
    $region56: #{tpu_custom_call.1} parent=5 // pred_fallthru
      _
  $region6: #{tpu_custom_call.1} parent=0 // loop_footer
    %s17 = sadd.s32 1, %s13
  $region7: #{tpu_custom_call.1} parent=0 // loop_footer_branch
    %12 = sbr.rel target = $region3
  $region8: #{tpu_custom_call.1} parent=0 // loop_exit
    _

</llo_original>
